<compile_context>
chip_gen: v5e
topology: v5e:2x2
jax: 0.10.0
libtpu: 0.0.40
codegen_flags: <defaults>
</compile_context>

<pallas_src>
import jax
import jax.numpy as jnp
from jax import lax
from jax.experimental import pallas as pl
from jax.experimental.pallas import tpu as pltpu

# ---- small but shape-consistent hyperparameters -----------------------------
VOCAB = 64            # input_dim (vocab size) -- small synthetic vocab
EMB = 128             # embedding_dim
N_FILTERS = 3         # n_filters
FILTER_SIZES = (3, 6)
OUT_DIM = 128         # output_dim
SEQ = 16              # sequence length
BATCH = 2             # batch size

NPAD = 128                                   # lane-padded packed conv width
_OFF = (0, FILTER_SIZES[0] * N_FILTERS)      # column offset of each conv group


def cnn_kernel(tok_ref, wfused_ref, b0_ref, b1_ref, wfc_ref, bfc_ref, out_ref):
    """Whole-batch forward pass in one invocation.

    tok_ref    : [B*S, 1]  int32 token ids (batch-major)
    wfused_ref : [V, NPAD] embedding table folded into packed conv weights;
                 column (conv c, tap i, filter f) = _OFF[c] + i*F + f
    b*_ref     : [1, F]    conv biases
    wfc_ref    : [2F, OUT] fc weight (pre-transposed vs torch Linear.weight)
    bfc_ref    : [1, OUT]  fc bias
    out_ref    : [B, OUT]  log-softmax output
    """
    bs = tok_ref.shape[0]
    b_n, out_dim = out_ref.shape
    seq = bs // b_n
    vocab = wfused_ref.shape[0]
    nf = b0_ref.shape[1]
    fs0, fs1 = FILTER_SIZES

    # --- embedding gather + all conv taps as ONE one-hot MXU matmul ----------
    tok = tok_ref[...]                                           # [BS, 1] i32
    onehot = (tok == lax.broadcasted_iota(jnp.int32, (bs, vocab), 1)
              ).astype(jnp.float32)                              # [BS, V]
    # y[t, OFF[c] + i*F + f] = sum_e table[tok[t], e] * conv_c_weight[i, e, f]
    y = jnp.dot(onehot, wfused_ref[...],
                preferred_element_type=jnp.float32)              # [BS, NPAD]

    b0 = b0_ref[...]                                             # [1, F]
    b1 = b1_ref[...]                                             # [1, F]

    # --- per-batch tap accumulation, ReLU, global max pool -------------------
    # Conv windows never cross batch boundaries because taps are taken from
    # statically sliced row ranges of the batch-major [B*S, NPAD] tensor.
    def conv_pool(lo, off, fs, bias):
        length = seq - fs + 1
        acc = y[lo:lo + length, off:off + nf]
        for i in range(1, fs):
            acc = acc + y[lo + i:lo + i + length,
                          off + i * nf:off + (i + 1) * nf]
        acc = jnp.maximum(acc + bias, 0.0)                       # [L, F]
        return jnp.max(acc, axis=0, keepdims=True)               # [1, F]

    p0_rows, p1_rows = [], []
    for b in range(b_n):
        lo = b * seq
        p0_rows.append(conv_pool(lo, _OFF[0], fs0, b0))
        p1_rows.append(conv_pool(lo, _OFF[1], fs1, b1))
    pooled0 = jnp.concatenate(p0_rows, axis=0)                   # [B, F]
    pooled1 = jnp.concatenate(p1_rows, axis=0)                   # [B, F]

    # --- FC as VPU broadcast-FMAs (dropout == identity at inference) ---------
    # TODO(synk): dropout is a no-op here (inference); training-mode dropout
    # would use pltpu.prng_seed / pltpu.stateful_bernoulli.
    wfc = wfc_ref[...]                                           # [2F, OUT]
    logits = jnp.zeros((b_n, out_dim), jnp.float32) + bfc_ref[...]
    for f in range(nf):
        logits = logits + pooled0[:, f:f + 1] * wfc[f:f + 1, :]
        logits = logits + pooled1[:, f:f + 1] * wfc[nf + f:nf + f + 1, :]

    # --- stable log-softmax along the feature axis ----------------------------
    m = jnp.max(logits, axis=1, keepdims=True)
    z = logits - m
    lse = jnp.log(jnp.sum(jnp.exp(z), axis=1, keepdims=True))
    out_ref[...] = z - lse


@jax.jit
def cnn_malware_model5_forward(text, emb_table, w0, b0, w1, b1, wfc, bfc):
    """text: [S, B] int32 token ids (same convention as the PyTorch module)."""
    S, B = text.shape
    assert S >= max(FILTER_SIZES), "sequence shorter than the largest filter"
    tokens = text.T.reshape(B * S, 1).astype(jnp.int32)          # batch-major

    # Pack both convs' taps into one lane-dense [E, 128] weight matrix:
    # column (conv c, tap i, filter f) -> _OFF[c] + i*F + f.  Conv weights are
    # supplied as [fs, E, F] (== torch Conv2d weight[f, 0, i, e] -> w[i, e, f]).
    w0_cols = jnp.transpose(w0, (1, 0, 2)).reshape(EMB, FILTER_SIZES[0] * N_FILTERS)
    w1_cols = jnp.transpose(w1, (1, 0, 2)).reshape(EMB, FILTER_SIZES[1] * N_FILTERS)
    ncols = (FILTER_SIZES[0] + FILTER_SIZES[1]) * N_FILTERS
    w_all = jnp.concatenate(
        [w0_cols, w1_cols, jnp.zeros((EMB, NPAD - ncols), jnp.float32)], axis=1)
    # Weight folding (input-independent): embedding feeds only the convs, so
    # fold the table into the packed conv weights -> single in-kernel matmul
    # and ~half the HBM->VMEM parameter traffic.
    w_fused = jnp.dot(emb_table, w_all,
                      preferred_element_type=jnp.float32)        # [V, NPAD]

    vmem = pl.BlockSpec(memory_space=pltpu.MemorySpace.VMEM)
    return pl.pallas_call(
        cnn_kernel,
        out_shape=jax.ShapeDtypeStruct((B, OUT_DIM), jnp.float32),
        in_specs=[vmem] * 6,
        out_specs=vmem,
    )(tokens, w_fused, b0, b1, wfc, bfc)


def _reference_forward(text, emb_table, w0, b0, w1, b1, wfc, bfc):
    """Pure-JAX reference mirroring the PyTorch module (dropout = identity)."""
    tokens = text.T                                              # [B, S]
    emb = emb_table[tokens]                                      # [B, S, E]
    pooled = []
    for w, bias, fs in ((w0, b0, FILTER_SIZES[0]), (w1, b1, FILTER_SIZES[1])):
        length = emb.shape[1] - fs + 1
        conv = jnp.stack(
            [sum(jnp.einsum("be,ef->bf", emb[:, t + i, :], w[i])
                 for i in range(fs))
             for t in range(length)], axis=1)                    # [B, L, F]
        conv = jnp.maximum(conv + bias.reshape(1, 1, -1), 0.0)
        pooled.append(jnp.max(conv, axis=1))                     # [B, F]
    cat = jnp.concatenate(pooled, axis=1)                        # [B, 2F]
    logits = cat @ wfc + bfc                                     # [B, OUT]
    return jax.nn.log_softmax(logits, axis=1)


if __name__ == "__main__":
    key = jax.random.PRNGKey(0)
    ks = jax.random.split(key, 8)

    # Deterministic synthetic parameters (shapes follow the module __init__).
    emb_table = 0.1 * jax.random.normal(ks[0], (VOCAB, EMB), jnp.float32)
    w0 = 0.05 * jax.random.normal(ks[1], (FILTER_SIZES[0], EMB, N_FILTERS),
                                  jnp.float32)
    b0 = 0.05 * jax.random.normal(ks[2], (1, N_FILTERS), jnp.float32)
    w1 = 0.05 * jax.random.normal(ks[3], (FILTER_SIZES[1], EMB, N_FILTERS),
                                  jnp.float32)
    b1 = 0.05 * jax.random.normal(ks[4], (1, N_FILTERS), jnp.float32)
    wfc = 0.1 * jax.random.normal(ks[5], (2 * N_FILTERS, OUT_DIM), jnp.float32)
    bfc = 0.1 * jax.random.normal(ks[6], (1, OUT_DIM), jnp.float32)

    # Input token ids: [seq_len, batch], as the PyTorch module expects.
    text = jax.random.randint(ks[7], (SEQ, BATCH), 0, VOCAB, jnp.int32)

    out = cnn_malware_model5_forward(text, emb_table, w0, b0, w1, b1, wfc, bfc)
    out = jax.block_until_ready(out)

    assert out.shape == (BATCH, OUT_DIM)
    assert bool(jnp.all(jnp.isfinite(out)))
    # log_softmax rows must (exp-)sum to ~1
    assert bool(jnp.allclose(jnp.sum(jnp.exp(out), axis=1), 1.0, atol=1e-4))

    # Numerical check against an independent pure-JAX reference.
    ref = _reference_forward(text, emb_table, w0, b0, w1, b1, wfc, bfc)
    assert bool(jnp.allclose(out, ref, atol=5e-3, rtol=1e-3)), \
        float(jnp.max(jnp.abs(out - ref)))

    print("KERNEL_OK")
</pallas_src>

<mosaic_0001>
module attributes {stable_mosaic.version = 11 : i64} {
  func.func @cnn_kernel(%arg0: memref<32x1xi32, #tpu.memory_space<vmem>>, %arg1: memref<64x128xf32, #tpu.memory_space<vmem>>, %arg2: memref<1x3xf32, #tpu.memory_space<vmem>>, %arg3: memref<1x3xf32, #tpu.memory_space<vmem>>, %arg4: memref<6x128xf32, #tpu.memory_space<vmem>>, %arg5: memref<1x128xf32, #tpu.memory_space<vmem>>, %arg6: memref<2x128xf32, #tpu.memory_space<vmem>>) attributes {dimension_semantics = [], scalar_prefetch = 0 : i64, scratch_operands = 0 : i64, tpu.core_type = #tpu.core_type<tc>} {
    %c0 = arith.constant 0 : index
    %c0_0 = arith.constant 0 : index
    %0 = vector.load %arg0[%c0, %c0_0] : memref<32x1xi32, #tpu.memory_space<vmem>>, vector<32x1xi32>
    %1 = tpu.iota {dimensions = array<i32: 1>} : vector<32x64xi32>
    %2 = vector.broadcast %0 : vector<32x1xi32> to vector<32x64xi32>
    %3 = arith.cmpi eq, %2, %1 : vector<32x64xi32>
    %4 = arith.extui %3 : vector<32x64xi1> to vector<32x64xi32>
    %5 = arith.sitofp %4 : vector<32x64xi32> to vector<32x64xf32>
    %c0_1 = arith.constant 0 : index
    %c0_2 = arith.constant 0 : index
    %6 = vector.load %arg1[%c0_1, %c0_2] : memref<64x128xf32, #tpu.memory_space<vmem>>, vector<64x128xf32>
    %cst = arith.constant dense<0.000000e+00> : vector<32x128xf32>
    %7 = tpu.matmul %5, %6, %cst {dimension_numbers = #tpu.dot_dimension_numbers<[1], [0], [0], [1], [0, 0, 1, 1], [], []>} : vector<32x64xf32>, vector<64x128xf32>, vector<32x128xf32> -> vector<32x128xf32>
    %c0_3 = arith.constant 0 : index
    %c0_4 = arith.constant 0 : index
    %8 = vector.load %arg2[%c0_3, %c0_4] : memref<1x3xf32, #tpu.memory_space<vmem>>, vector<1x3xf32>
    %c0_5 = arith.constant 0 : index
    %c0_6 = arith.constant 0 : index
    %9 = vector.load %arg3[%c0_5, %c0_6] : memref<1x3xf32, #tpu.memory_space<vmem>>, vector<1x3xf32>
    %10 = vector.extract_strided_slice %7 {offsets = [0, 0], sizes = [14, 3], strides = [1, 1]} : vector<32x128xf32> to vector<14x3xf32>
    %11 = vector.extract_strided_slice %7 {offsets = [1, 3], sizes = [14, 3], strides = [1, 1]} : vector<32x128xf32> to vector<14x3xf32>
    %12 = arith.addf %10, %11 : vector<14x3xf32>
    %13 = vector.extract_strided_slice %7 {offsets = [2, 6], sizes = [14, 3], strides = [1, 1]} : vector<32x128xf32> to vector<14x3xf32>
    %14 = arith.addf %12, %13 : vector<14x3xf32>
    %15 = vector.broadcast %8 : vector<1x3xf32> to vector<14x3xf32>
    %16 = arith.addf %14, %15 : vector<14x3xf32>
    %cst_7 = arith.constant 0.000000e+00 : f32
    %17 = vector.broadcast %cst_7 : f32 to vector<14x3xf32>
    %18 = arith.maximumf %16, %17 : vector<14x3xf32>
    %cst_8 = arith.constant dense<0xFF800000> : vector<3xf32>
    %19 = vector.multi_reduction <maximumf>, %18, %cst_8 [0] : vector<14x3xf32> to vector<3xf32>
    %20 = vector.shape_cast %19 : vector<3xf32> to vector<1x3xf32>
    %21 = vector.extract_strided_slice %7 {offsets = [0, 9], sizes = [11, 3], strides = [1, 1]} : vector<32x128xf32> to vector<11x3xf32>
    %22 = vector.extract_strided_slice %7 {offsets = [1, 12], sizes = [11, 3], strides = [1, 1]} : vector<32x128xf32> to vector<11x3xf32>
    %23 = arith.addf %21, %22 : vector<11x3xf32>
    %24 = vector.extract_strided_slice %7 {offsets = [2, 15], sizes = [11, 3], strides = [1, 1]} : vector<32x128xf32> to vector<11x3xf32>
    %25 = arith.addf %23, %24 : vector<11x3xf32>
    %26 = vector.extract_strided_slice %7 {offsets = [3, 18], sizes = [11, 3], strides = [1, 1]} : vector<32x128xf32> to vector<11x3xf32>
    %27 = arith.addf %25, %26 : vector<11x3xf32>
    %28 = vector.extract_strided_slice %7 {offsets = [4, 21], sizes = [11, 3], strides = [1, 1]} : vector<32x128xf32> to vector<11x3xf32>
    %29 = arith.addf %27, %28 : vector<11x3xf32>
    %30 = vector.extract_strided_slice %7 {offsets = [5, 24], sizes = [11, 3], strides = [1, 1]} : vector<32x128xf32> to vector<11x3xf32>
    %31 = arith.addf %29, %30 : vector<11x3xf32>
    %32 = vector.broadcast %9 : vector<1x3xf32> to vector<11x3xf32>
    %33 = arith.addf %31, %32 : vector<11x3xf32>
    %cst_9 = arith.constant 0.000000e+00 : f32
    %34 = vector.broadcast %cst_9 : f32 to vector<11x3xf32>
    %35 = arith.maximumf %33, %34 : vector<11x3xf32>
    %cst_10 = arith.constant dense<0xFF800000> : vector<3xf32>
    %36 = vector.multi_reduction <maximumf>, %35, %cst_10 [0] : vector<11x3xf32> to vector<3xf32>
    %37 = vector.shape_cast %36 : vector<3xf32> to vector<1x3xf32>
    %38 = vector.extract_strided_slice %7 {offsets = [16, 0], sizes = [14, 3], strides = [1, 1]} : vector<32x128xf32> to vector<14x3xf32>
    %39 = vector.extract_strided_slice %7 {offsets = [17, 3], sizes = [14, 3], strides = [1, 1]} : vector<32x128xf32> to vector<14x3xf32>
    %40 = arith.addf %38, %39 : vector<14x3xf32>
    %41 = vector.extract_strided_slice %7 {offsets = [18, 6], sizes = [14, 3], strides = [1, 1]} : vector<32x128xf32> to vector<14x3xf32>
    %42 = arith.addf %40, %41 : vector<14x3xf32>
    %43 = vector.broadcast %8 : vector<1x3xf32> to vector<14x3xf32>
    %44 = arith.addf %42, %43 : vector<14x3xf32>
    %cst_11 = arith.constant 0.000000e+00 : f32
    %45 = vector.broadcast %cst_11 : f32 to vector<14x3xf32>
    %46 = arith.maximumf %44, %45 : vector<14x3xf32>
    %cst_12 = arith.constant dense<0xFF800000> : vector<3xf32>
    %47 = vector.multi_reduction <maximumf>, %46, %cst_12 [0] : vector<14x3xf32> to vector<3xf32>
    %48 = vector.shape_cast %47 : vector<3xf32> to vector<1x3xf32>
    %49 = vector.extract_strided_slice %7 {offsets = [16, 9], sizes = [11, 3], strides = [1, 1]} : vector<32x128xf32> to vector<11x3xf32>
    %50 = vector.extract_strided_slice %7 {offsets = [17, 12], sizes = [11, 3], strides = [1, 1]} : vector<32x128xf32> to vector<11x3xf32>
    %51 = arith.addf %49, %50 : vector<11x3xf32>
    %52 = vector.extract_strided_slice %7 {offsets = [18, 15], sizes = [11, 3], strides = [1, 1]} : vector<32x128xf32> to vector<11x3xf32>
    %53 = arith.addf %51, %52 : vector<11x3xf32>
    %54 = vector.extract_strided_slice %7 {offsets = [19, 18], sizes = [11, 3], strides = [1, 1]} : vector<32x128xf32> to vector<11x3xf32>
    %55 = arith.addf %53, %54 : vector<11x3xf32>
    %56 = vector.extract_strided_slice %7 {offsets = [20, 21], sizes = [11, 3], strides = [1, 1]} : vector<32x128xf32> to vector<11x3xf32>
    %57 = arith.addf %55, %56 : vector<11x3xf32>
    %58 = vector.extract_strided_slice %7 {offsets = [21, 24], sizes = [11, 3], strides = [1, 1]} : vector<32x128xf32> to vector<11x3xf32>
    %59 = arith.addf %57, %58 : vector<11x3xf32>
    %60 = vector.broadcast %9 : vector<1x3xf32> to vector<11x3xf32>
    %61 = arith.addf %59, %60 : vector<11x3xf32>
    %cst_13 = arith.constant 0.000000e+00 : f32
    %62 = vector.broadcast %cst_13 : f32 to vector<11x3xf32>
    %63 = arith.maximumf %61, %62 : vector<11x3xf32>
    %cst_14 = arith.constant dense<0xFF800000> : vector<3xf32>
    %64 = vector.multi_reduction <maximumf>, %63, %cst_14 [0] : vector<11x3xf32> to vector<3xf32>
    %65 = vector.shape_cast %64 : vector<3xf32> to vector<1x3xf32>
    %66 = tpu.concatenate %20, %48 in 0 : vector<1x3xf32>, vector<1x3xf32> -> vector<2x3xf32>
    %67 = tpu.concatenate %37, %65 in 0 : vector<1x3xf32>, vector<1x3xf32> -> vector<2x3xf32>
    %c0_15 = arith.constant 0 : index
    %c0_16 = arith.constant 0 : index
    %68 = vector.load %arg4[%c0_15, %c0_16] : memref<6x128xf32, #tpu.memory_space<vmem>>, vector<6x128xf32>
    %cst_17 = arith.constant 0.000000e+00 : f32
    %69 = vector.broadcast %cst_17 : f32 to vector<2x128xf32>
    %c0_18 = arith.constant 0 : index
    %c0_19 = arith.constant 0 : index
    %70 = vector.load %arg5[%c0_18, %c0_19] : memref<1x128xf32, #tpu.memory_space<vmem>>, vector<1x128xf32>
    %71 = vector.broadcast %70 : vector<1x128xf32> to vector<2x128xf32>
    %72 = arith.addf %69, %71 : vector<2x128xf32>
    %73 = vector.extract_strided_slice %66 {offsets = [0, 0], sizes = [2, 1], strides = [1, 1]} : vector<2x3xf32> to vector<2x1xf32>
    %74 = vector.extract_strided_slice %68 {offsets = [0, 0], sizes = [1, 128], strides = [1, 1]} : vector<6x128xf32> to vector<1x128xf32>
    %75 = vector.broadcast %73 : vector<2x1xf32> to vector<2x128xf32>
    %76 = vector.broadcast %74 : vector<1x128xf32> to vector<2x128xf32>
    %77 = arith.mulf %75, %76 : vector<2x128xf32>
    %78 = arith.addf %72, %77 : vector<2x128xf32>
    %79 = vector.extract_strided_slice %67 {offsets = [0, 0], sizes = [2, 1], strides = [1, 1]} : vector<2x3xf32> to vector<2x1xf32>
    %80 = vector.extract_strided_slice %68 {offsets = [3, 0], sizes = [1, 128], strides = [1, 1]} : vector<6x128xf32> to vector<1x128xf32>
    %81 = vector.broadcast %79 : vector<2x1xf32> to vector<2x128xf32>
    %82 = vector.broadcast %80 : vector<1x128xf32> to vector<2x128xf32>
    %83 = arith.mulf %81, %82 : vector<2x128xf32>
    %84 = arith.addf %78, %83 : vector<2x128xf32>
    %85 = vector.extract_strided_slice %66 {offsets = [0, 1], sizes = [2, 1], strides = [1, 1]} : vector<2x3xf32> to vector<2x1xf32>
    %86 = vector.extract_strided_slice %68 {offsets = [1, 0], sizes = [1, 128], strides = [1, 1]} : vector<6x128xf32> to vector<1x128xf32>
    %87 = vector.broadcast %85 : vector<2x1xf32> to vector<2x128xf32>
    %88 = vector.broadcast %86 : vector<1x128xf32> to vector<2x128xf32>
    %89 = arith.mulf %87, %88 : vector<2x128xf32>
    %90 = arith.addf %84, %89 : vector<2x128xf32>
    %91 = vector.extract_strided_slice %67 {offsets = [0, 1], sizes = [2, 1], strides = [1, 1]} : vector<2x3xf32> to vector<2x1xf32>
    %92 = vector.extract_strided_slice %68 {offsets = [4, 0], sizes = [1, 128], strides = [1, 1]} : vector<6x128xf32> to vector<1x128xf32>
    %93 = vector.broadcast %91 : vector<2x1xf32> to vector<2x128xf32>
    %94 = vector.broadcast %92 : vector<1x128xf32> to vector<2x128xf32>
    %95 = arith.mulf %93, %94 : vector<2x128xf32>
    %96 = arith.addf %90, %95 : vector<2x128xf32>
    %97 = vector.extract_strided_slice %66 {offsets = [0, 2], sizes = [2, 1], strides = [1, 1]} : vector<2x3xf32> to vector<2x1xf32>
    %98 = vector.extract_strided_slice %68 {offsets = [2, 0], sizes = [1, 128], strides = [1, 1]} : vector<6x128xf32> to vector<1x128xf32>
    %99 = vector.broadcast %97 : vector<2x1xf32> to vector<2x128xf32>
    %100 = vector.broadcast %98 : vector<1x128xf32> to vector<2x128xf32>
    %101 = arith.mulf %99, %100 : vector<2x128xf32>
    %102 = arith.addf %96, %101 : vector<2x128xf32>
    %103 = vector.extract_strided_slice %67 {offsets = [0, 2], sizes = [2, 1], strides = [1, 1]} : vector<2x3xf32> to vector<2x1xf32>
    %104 = vector.extract_strided_slice %68 {offsets = [5, 0], sizes = [1, 128], strides = [1, 1]} : vector<6x128xf32> to vector<1x128xf32>
    %105 = vector.broadcast %103 : vector<2x1xf32> to vector<2x128xf32>
    %106 = vector.broadcast %104 : vector<1x128xf32> to vector<2x128xf32>
    %107 = arith.mulf %105, %106 : vector<2x128xf32>
    %108 = arith.addf %102, %107 : vector<2x128xf32>
    %cst_20 = arith.constant dense<0xFF800000> : vector<2xf32>
    %109 = vector.multi_reduction <maximumf>, %108, %cst_20 [1] : vector<2x128xf32> to vector<2xf32>
    %110 = vector.shape_cast %109 : vector<2xf32> to vector<2x1xf32>
    %111 = vector.broadcast %110 : vector<2x1xf32> to vector<2x128xf32>
    %112 = arith.subf %108, %111 : vector<2x128xf32>
    %113 = math.exp %112 : vector<2x128xf32>
    %cst_21 = arith.constant dense<0.000000e+00> : vector<2xf32>
    %114 = vector.multi_reduction <add>, %113, %cst_21 [1] : vector<2x128xf32> to vector<2xf32>
    %115 = vector.shape_cast %114 : vector<2xf32> to vector<2x1xf32>
    %116 = math.log %115 : vector<2x1xf32>
    %117 = vector.broadcast %116 : vector<2x1xf32> to vector<2x128xf32>
    %118 = arith.subf %112, %117 : vector<2x128xf32>
    %c0_22 = arith.constant 0 : index
    %c0_23 = arith.constant 0 : index
    %119 = vector.load %arg6[%c0_22, %c0_23] : memref<2x128xf32, #tpu.memory_space<vmem>>, vector<2x128xf32>
    tpu.vector_store %arg6[%c0_22, %c0_23], %118 {strides = array<i32>} : memref<2x128xf32, #tpu.memory_space<vmem>>, vector<2x128xf32>,
    return
  }
}

</mosaic_0001>

<llo_original>
// kernel: cnn_malware_model5_forward.1
$region0: #{cnn_malware_model5_forward.1}
  #allocation0 [shape = 'u32[]', space=smem, size = 0x4, offset = 0x4, fixed_abs, tag = 'smem constant byte address 0x4 - core index']
  #allocation1 [shape = 'u32[72,128]{1,0:T(1,128)}', space=vmem, size = 0x9000, scoped, tag = 'internal scratch']
  %s0 = inlined_call_operand.vmem [shape: s32[32,1], index: 0, kind: input, shape index: {}]
  %s1 = inlined_call_operand.vmem [shape: f32[64,128], index: 1, kind: input, shape index: {}]
  %s2 = inlined_call_operand.vmem [shape: f32[1,3], index: 2, kind: input, shape index: {}]
  %s3 = inlined_call_operand.vmem [shape: f32[1,3], index: 3, kind: input, shape index: {}]
  %s4 = inlined_call_operand.vmem [shape: f32[6,128], index: 4, kind: input, shape index: {}]
  %s5 = inlined_call_operand.vmem [shape: f32[1,128], index: 5, kind: input, shape index: {}]
  %s6 = inlined_call_operand.hbm [shape: f32[2,128], index: 6, kind: output, shape index: {}]
  %s7 = sld [smem:[#allocation0]]
  $region34: #{cnn_malware_model5_forward.1} parent=0
    _
  %s9 = ssub.s32 1, %s7
  %s10 = scalar_select 0, %s9, %s7
  $region1: #{cnn_malware_model5_forward.1} parent=0
    #allocation2 [shape = 'u8[1024]{0}', space=vmem, size = 0x400, scoped, tag = 'output window, operand 0, single buffered']
    #allocation3 [shape = 's32[1]{0}', space=sflag, size = 0x4, scoped, tag = 'scoped memory for cnn_malware_model5_forward.1']
    %11 = vsyncpa [#allocation3], 0
    // Predicated region
    $region2: #{cnn_malware_model5_forward.1} parent=1 // pred_check
      _
    $region3: #{cnn_malware_model5_forward.1} parent=1 // pred_check_branch
      %13 = sbr.rel (0) target = $region5
    $region4: #{cnn_malware_model5_forward.1} parent=1 // pred_region
      _
    $region5: #{cnn_malware_model5_forward.1} parent=1 // pred_fallthru
      _
    // Predicated region
    $region6: #{cnn_malware_model5_forward.1} parent=1 // pred_check
      _
    $region7: #{cnn_malware_model5_forward.1} parent=1 // pred_check_branch
      %15 = sbr.rel (0) target = $region9
    $region8: #{cnn_malware_model5_forward.1} parent=1 // pred_region
      _
    $region9: #{cnn_malware_model5_forward.1} parent=1 // pred_fallthru
      _
    // Predicated region
    $region10: #{cnn_malware_model5_forward.1} parent=1 // pred_check
      _
    $region11: #{cnn_malware_model5_forward.1} parent=1 // pred_check_branch
      %17 = sbr.rel (0) target = $region13
    $region12: #{cnn_malware_model5_forward.1} parent=1 // pred_region
      _
    $region13: #{cnn_malware_model5_forward.1} parent=1 // pred_fallthru
      _
    // Predicated region
    $region14: #{cnn_malware_model5_forward.1} parent=1 // pred_check
      _
    $region15: #{cnn_malware_model5_forward.1} parent=1 // pred_check_branch
      %19 = sbr.rel (0) target = $region17
    $region16: #{cnn_malware_model5_forward.1} parent=1 // pred_region
      _
    $region17: #{cnn_malware_model5_forward.1} parent=1 // pred_fallthru
      _
    // Predicated region
    $region18: #{cnn_malware_model5_forward.1} parent=1 // pred_check
      _
    $region19: #{cnn_malware_model5_forward.1} parent=1 // pred_check_branch
      %21 = sbr.rel (0) target = $region21
    $region20: #{cnn_malware_model5_forward.1} parent=1 // pred_region
      _
    $region21: #{cnn_malware_model5_forward.1} parent=1 // pred_fallthru
      _
    // Predicated region
    $region22: #{cnn_malware_model5_forward.1} parent=1 // pred_check
      _
    $region23: #{cnn_malware_model5_forward.1} parent=1 // pred_check_branch
      %23 = sbr.rel (0) target = $region25
    $region24: #{cnn_malware_model5_forward.1} parent=1 // pred_region
      _
    $region25: #{cnn_malware_model5_forward.1} parent=1 // pred_fallthru
      _
    %v24 = vld [vmem:[%s0] sm:$0xff]
    %v25 = vld [vmem:[%s0 + $0x8] sm:$0xff]
    %v26 = vld [vmem:[%s0 + $0x10] sm:$0xff]
    %v27 = vld [vmem:[%s0 + $0x18] sm:$0xff]
    %v28 = vlaneseq
    %v29 = vand.u32 %v28, 127
    %30 = vset.pattern.permute.xlu0 0
    %31 = vperm.xlu0 %30, %v24
    %v32 = vpop.permute.xlu0 %31
    %33 = vset.pattern.permute.xlu0 0
    %34 = vperm.xlu0 %33, %v25
    %v35 = vpop.permute.xlu0 %34
    %36 = vset.pattern.permute.xlu0 0
    %37 = vperm.xlu0 %36, %v26
    %v38 = vpop.permute.xlu0 %37
    %39 = vset.pattern.permute.xlu0 0
    %40 = vperm.xlu0 %39, %v27
    %v41 = vpop.permute.xlu0 %40
    %vm42 = vcmp.eq.s32.totalorder %v32, %v29
    %vm43 = vcmp.eq.s32.totalorder %v35, %v29
    %vm44 = vcmp.eq.s32.totalorder %v38, %v29
    %vm45 = vcmp.eq.s32.totalorder %v41, %v29
    %v46 = vsel %vm42, 1, 0
    %v47 = vsel %vm43, 1, 0
    %v48 = vsel %vm44, 1, 0
    %v49 = vsel %vm45, 1, 0
    %v50 = vcvt.s32.f32 %v46
    %v51 = vcvt.s32.f32 %v47
    %v52 = vcvt.s32.f32 %v48
    %v53 = vcvt.s32.f32 %v49
    %v54 = vld [vmem:[%s1] sm:$0xff]
    %v55 = vld [vmem:[%s1 + $0x8] sm:$0xff]
    %v56 = vld [vmem:[%s1 + $0x10] sm:$0xff]
    %v57 = vld [vmem:[%s1 + $0x18] sm:$0xff]
    %v58 = vld [vmem:[%s1 + $0x20] sm:$0xff]
    %v59 = vld [vmem:[%s1 + $0x28] sm:$0xff]
    %v60 = vld [vmem:[%s1 + $0x30] sm:$0xff]
    %v61 = vld [vmem:[%s1 + $0x38] sm:$0xff]
    %vm62 = vcmask 523264
    %v64 = vsel %vm62, %v50, 0
    %v67 = vsel %vm62, %v51, 0
    %v70 = vsel %vm62, %v52, 0
    %v73 = vsel %vm62, %v53, 0
    %75 = vmatpush.msra.mxu0 0.0
    %76 = vmatpush.msra.mxu0 0.0
    %77 = vmatpush.msra.mxu0 0.0
    %78 = vmatpush.msra.mxu0 0.0
    %79 = vmatpush.msra.mxu0 0.0
    %80 = vmatpush.msra.mxu0 0.0
    %81 = vmatpush.msra.mxu0 0.0
    %82 = vmatpush.msra.mxu0 0.0
    %83 = vmatpush.msra.mxu0 %v61
    %84 = vmatpush.msra.mxu0 %v60
    %85 = vmatpush.msra.mxu0 %v59
    %86 = vmatpush.msra.mxu0 %v58
    %87 = vmatpush.msra.mxu0 %v57
    %88 = vmatpush.msra.mxu0 %v56
    %89 = vmatpush.msra.mxu0 %v55
    %90 = vmatpush.msra.mxu0 %v54
    %91 = vmatmul.f32.gmra.mxu0 %v64
    %v92 = vpop.f32.mrf.mxu0
    %v93 = vadd.f32 0.0, %v92
    %94 = vmatmul.f32.gmra.mxu0 %v67
    %v95 = vpop.f32.mrf.mxu0
    %v96 = vadd.f32 0.0, %v95
    %97 = vmatmul.f32.gmra.mxu0 %v70
    %v98 = vpop.f32.mrf.mxu0
    %v99 = vadd.f32 0.0, %v98
    %100 = vmatmul.f32.gmra.mxu0 %v73
    %v101 = vpop.f32.mrf.mxu0
    %v102 = vadd.f32 0.0, %v101
    %103 = vdwg.mxu0
    %v104 = vld [vmem:[%s2] sm:$0x1]
    %v105 = vld [vmem:[%s3] sm:$0x1]
    %vm108 = vcmask 1046528
    %v109 = vrot.slane %v93, 1
    %v110 = vrot.slane %v96, 1
    %v111 = vsel %vm108, %v109, %v110
    %112 = vrot.lane.b32.xlu0 %v111, 125
    %v113 = vpop.permute.xlu0 %112
    %114 = vrot.lane.b32.xlu0 %v110, 125
    %v115 = vpop.permute.xlu0 %114
    %v118 = vadd.f32 %v93, %v113
    %v119 = vadd.f32 %v96, %v115
    %vm120 = vcmask 1045504
    %v121 = vrot.slane %v93, 2
    %v122 = vrot.slane %v96, 2
    %v123 = vsel %vm120, %v121, %v122
    %124 = vrot.lane.b32.xlu0 %v123, 122
    %v125 = vpop.permute.xlu0 %124
    %126 = vrot.lane.b32.xlu0 %v122, 122
    %v127 = vpop.permute.xlu0 %126
    %v130 = vadd.f32 %v118, %v125
    %v131 = vadd.f32 %v119, %v127
    %v133 = vperm.slane %v104, 0
    %v135 = vadd.f32 %v130, %v133
    %v136 = vadd.f32 %v131, %v133
    %v137 = vmax.f32 %v135, 0.0
    %v138 = vmax.f32 %v136, 0.0
    %vm139 = vcmask 23552
    %v140 = vsel %vm139, %v137, -inf
    %vm141 = vcmask 21504
    %v142 = vsel %vm141, %v138, -inf
    %v143 = vmax.f32 %v140, %v142
    %v144 = vrot.slane %v143, 4
    %v145 = vmax.f32 %v143, %v144
    %v146 = vrot.slane %v145, 2
    %v147 = vmax.f32 %v145, %v146
    %v148 = vrot.slane %v147, 1
    %v149 = vmax.f32 %v147, %v148
    %vm150 = vcmask 1044480
    %v151 = vrot.slane %v93, 3
    %v152 = vrot.slane %v96, 3
    %v153 = vsel %vm150, %v151, %v152
    %154 = vrot.lane.b32.xlu0 %v153, 119
    %v155 = vpop.permute.xlu0 %154
    %156 = vrot.lane.b32.xlu0 %v152, 119
    %v157 = vpop.permute.xlu0 %156
    %v160 = vadd.f32 %v130, %v155
    %v161 = vadd.f32 %v131, %v157
    %vm162 = vcmask 1043456
    %v163 = vrot.slane %v93, 4
    %v164 = vrot.slane %v96, 4
    %v165 = vsel %vm162, %v163, %v164
    %166 = vrot.lane.b32.xlu0 %v165, 116
    %v167 = vpop.permute.xlu0 %166
    %168 = vrot.lane.b32.xlu0 %v164, 116
    %v169 = vpop.permute.xlu0 %168
    %v172 = vadd.f32 %v160, %v167
    %v173 = vadd.f32 %v161, %v169
    %vm174 = vcmask 1042432
    %v175 = vrot.slane %v93, 5
    %v176 = vrot.slane %v96, 5
    %v177 = vsel %vm174, %v175, %v176
    %178 = vrot.lane.b32.xlu0 %v177, 113
    %v179 = vpop.permute.xlu0 %178
    %180 = vrot.lane.b32.xlu0 %v176, 113
    %v181 = vpop.permute.xlu0 %180
    %v184 = vadd.f32 %v172, %v179
    %v185 = vadd.f32 %v173, %v181
    %v187 = vperm.slane %v105, 0
    %188 = vrot.lane.b32.xlu0 %v187, 9
    %v189 = vpop.permute.xlu0 %188
    %v191 = vadd.f32 %v184, %v189
    %v192 = vadd.f32 %v185, %v189
    %v193 = vmax.f32 %v191, 0.0
    %v194 = vmax.f32 %v192, 0.0
    %vm195 = vcmask 97352
    %v196 = vsel %vm195, %v193, -inf
    %vm197 = vcmask 92232
    %v198 = vsel %vm197, %v194, -inf
    %v199 = vmax.f32 %v196, %v198
    %v200 = vrot.slane %v199, 4
    %v201 = vmax.f32 %v199, %v200
    %v202 = vrot.slane %v201, 2
    %v203 = vmax.f32 %v201, %v202
    %v204 = vrot.slane %v203, 1
    %v205 = vmax.f32 %v203, %v204
    %v208 = vrot.slane %v99, 1
    %v209 = vrot.slane %v102, 1
    %v210 = vsel %vm108, %v208, %v209
    %211 = vrot.lane.b32.xlu0 %v210, 125
    %v212 = vpop.permute.xlu0 %211
    %213 = vrot.lane.b32.xlu0 %v209, 125
    %v214 = vpop.permute.xlu0 %213
    %v217 = vadd.f32 %v99, %v212
    %v218 = vadd.f32 %v102, %v214
    %v219 = vrot.slane %v99, 2
    %v220 = vrot.slane %v102, 2
    %v221 = vsel %vm120, %v219, %v220
    %222 = vrot.lane.b32.xlu0 %v221, 122
    %v223 = vpop.permute.xlu0 %222
    %224 = vrot.lane.b32.xlu0 %v220, 122
    %v225 = vpop.permute.xlu0 %224
    %v228 = vadd.f32 %v217, %v223
    %v229 = vadd.f32 %v218, %v225
    %v230 = vadd.f32 %v228, %v133
    %v231 = vadd.f32 %v229, %v133
    %v232 = vmax.f32 %v230, 0.0
    %v233 = vmax.f32 %v231, 0.0
    %v234 = vsel %vm139, %v232, -inf
    %v235 = vsel %vm141, %v233, -inf
    %v236 = vmax.f32 %v234, %v235
    %v237 = vrot.slane %v236, 4
    %v238 = vmax.f32 %v236, %v237
    %v239 = vrot.slane %v238, 2
    %v240 = vmax.f32 %v238, %v239
    %v241 = vrot.slane %v240, 1
    %v242 = vmax.f32 %v240, %v241
    %v243 = vrot.slane %v99, 3
    %v244 = vrot.slane %v102, 3
    %v245 = vsel %vm150, %v243, %v244
    %246 = vrot.lane.b32.xlu0 %v245, 119
    %v247 = vpop.permute.xlu0 %246
    %248 = vrot.lane.b32.xlu0 %v244, 119
    %v249 = vpop.permute.xlu0 %248
    %v252 = vadd.f32 %v228, %v247
    %v253 = vadd.f32 %v229, %v249
    %v254 = vrot.slane %v99, 4
    %v255 = vrot.slane %v102, 4
    %v256 = vsel %vm162, %v254, %v255
    %257 = vrot.lane.b32.xlu0 %v256, 116
    %v258 = vpop.permute.xlu0 %257
    %259 = vrot.lane.b32.xlu0 %v255, 116
    %v260 = vpop.permute.xlu0 %259
    %v263 = vadd.f32 %v252, %v258
    %v264 = vadd.f32 %v253, %v260
    %v265 = vrot.slane %v99, 5
    %v266 = vrot.slane %v102, 5
    %v267 = vsel %vm174, %v265, %v266
    %268 = vrot.lane.b32.xlu0 %v267, 113
    %v269 = vpop.permute.xlu0 %268
    %270 = vrot.lane.b32.xlu0 %v266, 113
    %v271 = vpop.permute.xlu0 %270
    %v274 = vadd.f32 %v263, %v269
    %v275 = vadd.f32 %v264, %v271
    %v276 = vadd.f32 %v274, %v189
    %v277 = vadd.f32 %v275, %v189
    %v278 = vmax.f32 %v276, 0.0
    %v279 = vmax.f32 %v277, 0.0
    %v280 = vsel %vm195, %v278, -inf
    %v281 = vsel %vm197, %v279, -inf
    %v282 = vmax.f32 %v280, %v281
    %v283 = vrot.slane %v282, 4
    %v284 = vmax.f32 %v282, %v283
    %v285 = vrot.slane %v284, 2
    %v286 = vmax.f32 %v284, %v285
    %v287 = vrot.slane %v286, 1
    %v288 = vmax.f32 %v286, %v287
    %vm289 = vcmask 1040384
    %v290 = vsel %vm289, %v149, %v242
    %v291 = vsel %vm289, %v205, %v288
    %v292 = vld [vmem:[%s4] sm:$0x3f]
    %v293 = vld [vmem:[%s5] sm:$0x1]
    %v295 = vperm.slane %v293, 0
    %v297 = vadd.f32 %v295, 0.0
    %299 = vset.pattern.permute.xlu0 0
    %300 = vperm.xlu0 %299, %v290
    %v301 = vpop.permute.xlu0 %300
    %v303 = vperm.slane %v292, 0
    %v304 = vmul.f32 %v301, %v303
    %v305 = vadd.f32 %v297, %v304
    %307 = vset.pattern.permute.xlu0 9
    %308 = vperm.xlu0 %307, %v291
    %v309 = vpop.permute.xlu0 %308
    %v311 = vperm.slane %v292, 3
    %v312 = vmul.f32 %v309, %v311
    %v313 = vadd.f32 %v305, %v312
    %314 = vset.pattern.permute.xlu0 1
    %315 = vperm.xlu0 %314, %v290
    %v316 = vpop.permute.xlu0 %315
    %v318 = vperm.slane %v292, 1
    %v319 = vmul.f32 %v316, %v318
    %v320 = vadd.f32 %v313, %v319
    %321 = vset.pattern.permute.xlu0 10
    %322 = vperm.xlu0 %321, %v291
    %v323 = vpop.permute.xlu0 %322
    %v325 = vperm.slane %v292, 4
    %v326 = vmul.f32 %v323, %v325
    %v327 = vadd.f32 %v320, %v326
    %328 = vset.pattern.permute.xlu0 2
    %329 = vperm.xlu0 %328, %v290
    %v330 = vpop.permute.xlu0 %329
    %v332 = vperm.slane %v292, 2
    %v333 = vmul.f32 %v330, %v332
    %v334 = vadd.f32 %v327, %v333
    %335 = vset.pattern.permute.xlu0 11
    %336 = vperm.xlu0 %335, %v291
    %v337 = vpop.permute.xlu0 %336
    %v339 = vperm.slane %v292, 5
    %v340 = vmul.f32 %v337, %v339
    %v341 = vadd.f32 %v334, %v340
    %vm342 = vcmask 1041408
    %v343 = vsel %vm342, %v341, -inf
    %344 = vmax.xlane.f32.xlu0 %v343
    %v345 = vpop.xlane.xlu0 %344
    %v346 = vsub.f32 %v341, %v345
    %v347 = vmul.f32 %v346, 1.442695
    %v348 = vpow.pop %v347
    %v349 = vsel %vm342, %v348, 0.0
    %350 = vadd.xlane.f32.xlu0 %v349
    %v351 = vpop.xlane.xlu0 %350
    %v352 = vlog2.pop %v351
    %v353 = vmul.f32 %v352, 0.6931472
    %v354 = vsub.f32 %v346, %v353
    %355 = vst [vmem:[#allocation2] sm:$0x3] %v354
    // Predicated region
    $region26: #{cnn_malware_model5_forward.1} parent=1 // pred_check
      _
    $region27: #{cnn_malware_model5_forward.1} parent=1 // pred_check_branch
      %357 = sbr.rel (0) target = $region29
    $region28: #{cnn_malware_model5_forward.1} parent=1 // pred_region
      %359 = vsyncadd [#allocation3], 0
      %s361 = sshll.u32 [#allocation2], 4
      %s362 = int_to_ptr.vmem [resolvable:$true] %s361
      %s363 = sshll.u32 %s6, 4
      %s364 = int_to_ptr.hbm [resolvable:$true] %s363
      %366 = dma.vmem_to_hbm [thread:$0]  %s362, 32, %s364, [#allocation3]
    $region29: #{cnn_malware_model5_forward.1} parent=1 // pred_fallthru
      _
    // Predicated region
    $region30: #{cnn_malware_model5_forward.1} parent=1 // pred_check
      _
    $region31: #{cnn_malware_model5_forward.1} parent=1 // pred_check_branch
      %368 = sbr.rel (0) target = $region33
    $region32: #{cnn_malware_model5_forward.1} parent=1 // pred_region
      %370 = dma.done [#allocation3], 32
    $region33: #{cnn_malware_model5_forward.1} parent=1 // pred_fallthru
      _
    %371 = vsyncpa [#allocation3], 1

</llo_original>
